<compile_context>
chip_gen: v7x
topology: tpu7x:2x2x1
jax: 0.10.0
libtpu: 0.0.40
codegen_flags: <defaults>
</compile_context>

<pallas_src>
import functools

import jax
import jax.numpy as jnp
from jax.experimental import pallas as pl
from jax.experimental.pallas import tpu as pltpu


def _round_up(x: int, m: int) -> int:
    return ((x + m - 1) // m) * m


def _default_tiles():
    """Architecture-aware (tm, th) defaults (see perf review)."""
    kind = ""
    try:
        kind = jax.devices()[0].device_kind.lower()
    except Exception:
        pass
    if "v5 lite" in kind or "v5e" in kind or "v5lite" in kind:
        return 256, 512     # v5e roofline (~240 FLOPs/B) already met at tm=256
    if "v7" in kind:
        return 512, 256     # 64 MiB VMEM/TC: keep footprint < ~56 MiB
    if "v6" in kind:
        return 1024, 512    # ~650 FLOPs/B roofline needs tm ~ 768-1024
    return 512, 512


def _ffn_step(x_ref, w13_ref, w2_ref, acc_ref, *, th):
    """One (row-tile, hidden-tile) step; accumulates the partial down-proj
    into acc_ref (f32).  acc_ref may be the output block itself (f32 output)
    or a VMEM scratch accumulator."""
    h = pl.program_id(1)

    # Fused gate+up projection: one MXU contraction, f32 accumulation.
    hp = jnp.dot(x_ref[...], w13_ref[...], preferred_element_type=jnp.float32)
    h1 = hp[:, :th]            # w1(x) tile
    h3 = hp[:, th:]            # w3(x) tile

    # SiLU gate: exp on the EUP, approximate reciprocal on the EUP (vrcp)
    # instead of an exact VPU divide -> VALU stays free under the MXU.
    sig = pl.reciprocal(1.0 + jnp.exp(-h1), approx=True)
    gated = (h1 * sig) * h3

    partial = jnp.dot(gated.astype(w2_ref.dtype), w2_ref[...],
                      preferred_element_type=jnp.float32)

    # Init-with-first-product: saves a full tm*Dp f32 zero pass per row tile.
    @pl.when(h == 0)
    def _():
        acc_ref[...] = partial

    @pl.when(h > 0)
    def _():
        acc_ref[...] += partial


def _ffn_kernel_f32out(x_ref, w13_ref, w2_ref, o_ref, *, th):
    # f32 output: accumulate straight into the (resident) output block.
    _ffn_step(x_ref, w13_ref, w2_ref, o_ref, th=th)


def _ffn_kernel_scratch(x_ref, w13_ref, w2_ref, o_ref, acc_ref, *, th):
    _ffn_step(x_ref, w13_ref, w2_ref, acc_ref, th=th)

    @pl.when(pl.program_id(1) == pl.num_programs(1) - 1)
    def _():
        o_ref[...] = acc_ref[...].astype(o_ref.dtype)


def pack_ffn_weights(w1, w2, w3, *, th=None):
    """One-time packing of PyTorch-layout weights into the kernel layout.

    w1, w3: (H, D) nn.Linear weights (gate / up projections)
    w2:     (D, H) nn.Linear weight  (down projection)

    Returns (w13, w2t, dims):
      w13 : (nh, Dp, 2*th)  tile-major [w1^T tile | w3^T tile] per hidden tile
                            (each grid step's weight DMA is one contiguous slab)
      w2t : (nh, th, Dp)    tile-major w2^T
      dims: (D, H, Dp, Hp, th)

    Do this once at model-load time, NOT per forward call.
    """
    H, D = w1.shape
    assert w3.shape == (H, D) and w2.shape == (D, H)

    if th is None:
        _, th = _default_tiles()
    th = _round_up(th, 128)
    Dp = _round_up(D, 128)                    # lane-dense model dim
    th_eff = min(th, _round_up(H, 128))       # hidden tile (multiple of 128)
    Hp = _round_up(H, th_eff)                 # padded hidden dim
    nh = Hp // th_eff

    w1t = jnp.pad(w1.T, ((0, Dp - D), (0, Hp - H)))   # (Dp, Hp), zero-padded
    w3t = jnp.pad(w3.T, ((0, Dp - D), (0, Hp - H)))

    # Tile-major 3-D layout: block h = [w1^T tile h | w3^T tile h], contiguous.
    w13 = jnp.concatenate(
        [w1t.reshape(Dp, nh, th_eff), w3t.reshape(Dp, nh, th_eff)], axis=2
    ).transpose(1, 0, 2)                               # (nh, Dp, 2*th)

    w2t = jnp.pad(w2.T, ((0, Hp - H), (0, Dp - D)))    # (Hp, Dp)
    w2t = w2t.reshape(nh, th_eff, Dp)                  # (nh, th, Dp)

    return w13, w2t, (D, H, Dp, Hp, th_eff)


def feed_forward(x, w13, w2t, dims, *, tm=None, weight_buffers=2,
                 vmem_limit_bytes=None):
    """Apply the SwiGLU FFN to x of shape (..., D) using packed weights."""
    D, H, Dp, Hp, th_eff = dims
    orig_shape = x.shape
    orig_dtype = x.dtype
    assert orig_shape[-1] == D, "last dim of x must equal block_size"

    if tm is None:
        tm, _ = _default_tiles()

    # Keep the MXU on the fast same-dtype path (no silent mixed promotion).
    if x.dtype != w13.dtype:
        x = x.astype(w13.dtype)

    xm = x.reshape(-1, D)
    M = xm.shape[0]

    # Row tile: multiple of 128 for MXU alignment at production shapes;
    # small M falls back to a 16-row (sublane-aligned) tile via padding.
    tm = _round_up(tm, 128)
    tm_eff = min(tm, _round_up(M, 16))
    Mp = _round_up(M, tm_eff)

    xp = xm
    if (Mp, Dp) != (M, D):
        xp = jnp.pad(xm, ((0, Mp - M), (0, Dp - D)))

    nh = Hp // th_eff
    grid = (Mp // tm_eff, nh)   # (parallel rows, hidden reduction)

    f32_out = orig_dtype == jnp.float32

    # --- VMEM budget from the actual buffered footprint (+25% headroom). ---
    x_b = xp.dtype.itemsize
    w_b = w13.dtype.itemsize
    o_b = jnp.dtype(orig_dtype).itemsize
    wbuf = max(2, weight_buffers)
    need = (2 * tm_eff * Dp * x_b                    # x double-buffered
            + 2 * tm_eff * Dp * o_b                  # out
            + wbuf * Dp * (2 * th_eff) * w_b         # w13 tiles
            + wbuf * th_eff * Dp * w_b               # w2t tiles
            + (0 if f32_out else tm_eff * Dp * 4)    # f32 acc scratch
            + 2 * tm_eff * (2 * th_eff) * 4)         # hp / gated temporaries
    if vmem_limit_bytes is None:
        vmem_limit_bytes = min(max(int(need * 1.25), 32 << 20), 100 << 20)

    # Optional deeper weight buffering if profiling shows exposed DMA.
    wspec_kw = {}
    if weight_buffers > 2:
        wspec_kw = dict(pipeline_mode=pl.Buffered(weight_buffers))

    in_specs = [
        pl.BlockSpec((tm_eff, Dp), lambda i, h: (i, 0)),                       # x rows
        pl.BlockSpec((None, Dp, 2 * th_eff), lambda i, h: (h, 0, 0), **wspec_kw),  # [w1t|w3t]
        pl.BlockSpec((None, th_eff, Dp), lambda i, h: (h, 0, 0), **wspec_kw),      # w2t tile
    ]
    out_specs = pl.BlockSpec((tm_eff, Dp), lambda i, h: (i, 0))

    if f32_out:
        kernel = functools.partial(_ffn_kernel_f32out, th=th_eff)
        scratch = []
    else:
        kernel = functools.partial(_ffn_kernel_scratch, th=th_eff)
        scratch = [pltpu.VMEM((tm_eff, Dp), jnp.float32)]

    cost = pl.CostEstimate(
        flops=6 * Mp * Hp * Dp,
        transcendentals=Mp * Hp,
        bytes_accessed=(xp.size * x_b + Mp * Dp * o_b
                        + (Mp // tm_eff) * (w13.size + w2t.size) * w_b),
    )

    out = pl.pallas_call(
        kernel,
        out_shape=jax.ShapeDtypeStruct((Mp, Dp), orig_dtype),
        grid_spec=pltpu.PrefetchScalarGridSpec(
            num_scalar_prefetch=0,
            grid=grid,
            in_specs=in_specs,
            out_specs=out_specs,
            scratch_shapes=scratch,
        ),
        compiler_params=pltpu.CompilerParams(
            dimension_semantics=("parallel", "arbitrary"),
            vmem_limit_bytes=vmem_limit_bytes,
        ),
        cost_estimate=cost,
    )(xp, w13, w2t)

    if (Mp, Dp) != (M, D):
        out = out[:M, :D]
    return out.reshape(orig_shape)


def _reference(x, w1, w2, w3):
    hp = jax.lax.Precision.HIGHEST
    h1 = jnp.einsum("...d,hd->...h", x, w1, precision=hp)
    h3 = jnp.einsum("...d,hd->...h", x, w3, precision=hp)
    gated = (h1 * jax.nn.sigmoid(h1)) * h3
    return jnp.einsum("...h,dh->...d", gated, w2, precision=hp)


if __name__ == "__main__":
    key = jax.random.PRNGKey(0)
    batch, seq = 2, 8
    block_size, hidden_dim = 32, 64   # config.block_size, config.hidden_dim

    kx, k1, k2, k3 = jax.random.split(key, 4)
    x = jax.random.normal(kx, (batch, seq, block_size), dtype=jnp.float32)

    # nn.Linear default init bound = 1/sqrt(fan_in).
    b1 = 1.0 / (block_size ** 0.5)
    b2 = 1.0 / (hidden_dim ** 0.5)
    w1 = jax.random.uniform(k1, (hidden_dim, block_size), jnp.float32, -b1, b1)
    w3 = jax.random.uniform(k3, (hidden_dim, block_size), jnp.float32, -b1, b1)
    w2 = jax.random.uniform(k2, (block_size, hidden_dim), jnp.float32, -b2, b2)

    # One-time weight packing (model-load time in real usage).
    w13, w2t, dims = pack_ffn_weights(w1, w2, w3)

    # f32 path (accumulates directly into the output block, no acc scratch).
    y = feed_forward(x, w13, w2t, dims)
    jax.block_until_ready(y)
    y_ref = _reference(x, w1, w2, w3)
    assert y.shape == x.shape
    # Slightly looser tolerance than exact f32 because of the EUP approx
    # reciprocal in the sigmoid.
    assert jnp.allclose(y, y_ref, atol=1e-3, rtol=1e-3), "f32 mismatch vs ref"

    # bf16 path (exercises the scratch-accumulator kernel + dtype handling).
    w13b, w2tb, dimsb = pack_ffn_weights(
        w1.astype(jnp.bfloat16), w2.astype(jnp.bfloat16), w3.astype(jnp.bfloat16))
    yb = feed_forward(x.astype(jnp.bfloat16), w13b, w2tb, dimsb)
    jax.block_until_ready(yb)
    assert yb.shape == x.shape and yb.dtype == jnp.bfloat16
    assert jnp.allclose(yb.astype(jnp.float32), y_ref, atol=3e-2, rtol=5e-2), \
        "bf16 mismatch vs ref"

    print("KERNEL_OK")
</pallas_src>

<mosaic_0001>
module attributes {stable_mosaic.version = 11 : i64} {
  func.func @_ffn_kernel_f32out(%arg0: i32, %arg1: i32, %arg2: memref<16x128xf32, #tpu.memory_space<vmem>>, %arg3: memref<1x128x256xf32, #tpu.memory_space<vmem>>, %arg4: memref<1x128x128xf32, #tpu.memory_space<vmem>>, %arg5: memref<16x128xf32, #tpu.memory_space<vmem>>) attributes {dimension_semantics = [#tpu.dimension_semantics<parallel>, #tpu.dimension_semantics<arbitrary>], iteration_bounds = array<i64: 1, 1>, scalar_prefetch = 0 : i64, scratch_operands = 0 : i64, tpu.core_type = #tpu.core_type<tc>, window_params = [{transform_indices = @transform_0, window_bounds = array<i64: 16, 128>}, {transform_indices = @transform_1, window_bounds = array<i64: 1, 128, 256>}, {transform_indices = @transform_2, window_bounds = array<i64: 1, 128, 128>}, {transform_indices = @transform_3, window_bounds = array<i64: 16, 128>}]} {
    %c0 = arith.constant 0 : index
    %c0_0 = arith.constant 0 : index
    %0 = vector.load %arg2[%c0, %c0_0] : memref<16x128xf32, #tpu.memory_space<vmem>>, vector<16x128xf32>
    %c0_1 = arith.constant 0 : index
    %c0_2 = arith.constant 0 : index
    %c0_3 = arith.constant 0 : index
    %1 = vector.load %arg3[%c0_1, %c0_2, %c0_3] : memref<1x128x256xf32, #tpu.memory_space<vmem>>, vector<1x128x256xf32>
    %2 = vector.shape_cast %1 : vector<1x128x256xf32> to vector<128x256xf32>
    %cst = arith.constant dense<0.000000e+00> : vector<16x256xf32>
    %3 = tpu.matmul %0, %2, %cst {dimension_numbers = #tpu.dot_dimension_numbers<[1], [0], [0], [1], [0, 0, 1, 1], [], []>} : vector<16x128xf32>, vector<128x256xf32>, vector<16x256xf32> -> vector<16x256xf32>
    %4 = vector.extract_strided_slice %3 {offsets = [0, 0], sizes = [16, 128], strides = [1, 1]} : vector<16x256xf32> to vector<16x128xf32>
    %5 = vector.extract_strided_slice %3 {offsets = [0, 128], sizes = [16, 128], strides = [1, 1]} : vector<16x256xf32> to vector<16x128xf32>
    %cst_4 = arith.constant 0.000000e+00 : f32
    %6 = vector.broadcast %cst_4 : f32 to vector<16x128xf32>
    %7 = arith.subf %6, %4 : vector<16x128xf32>
    %8 = math.exp %7 : vector<16x128xf32>
    %cst_5 = arith.constant 1.000000e+00 : f32
    %9 = vector.broadcast %cst_5 : f32 to vector<16x128xf32>
    %10 = arith.addf %9, %8 : vector<16x128xf32>
    %11 = tpu.reciprocal %10 {approx = true} : vector<16x128xf32> -> vector<16x128xf32>
    %12 = arith.mulf %4, %11 : vector<16x128xf32>
    %13 = arith.mulf %12, %5 : vector<16x128xf32>
    %c0_6 = arith.constant 0 : index
    %c0_7 = arith.constant 0 : index
    %c0_8 = arith.constant 0 : index
    %14 = vector.load %arg4[%c0_6, %c0_7, %c0_8] : memref<1x128x128xf32, #tpu.memory_space<vmem>>, vector<1x128x128xf32>
    %15 = vector.shape_cast %14 : vector<1x128x128xf32> to vector<128x128xf32>
    %cst_9 = arith.constant dense<0.000000e+00> : vector<16x128xf32>
    %16 = tpu.matmul %13, %15, %cst_9 {dimension_numbers = #tpu.dot_dimension_numbers<[1], [0], [0], [1], [0, 0, 1, 1], [], []>} : vector<16x128xf32>, vector<128x128xf32>, vector<16x128xf32> -> vector<16x128xf32>
    %c0_i32 = arith.constant 0 : i32
    %17 = arith.cmpi eq, %arg1, %c0_i32 : i32
    %18 = arith.extui %17 : i1 to i32
    %c0_i32_10 = arith.constant 0 : i32
    %19 = arith.cmpi ne, %18, %c0_i32_10 : i32
    scf.if %19 {
      %c0_13 = arith.constant 0 : index
      %c0_14 = arith.constant 0 : index
      %23 = vector.load %arg5[%c0_13, %c0_14] : memref<16x128xf32, #tpu.memory_space<vmem>>, vector<16x128xf32>
      tpu.vector_store %arg5[%c0_13, %c0_14], %16 {strides = array<i32>} : memref<16x128xf32, #tpu.memory_space<vmem>>, vector<16x128xf32>,
    } else {
    }
    %c0_i32_11 = arith.constant 0 : i32
    %20 = arith.cmpi sgt, %arg1, %c0_i32_11 : i32
    %21 = arith.extui %20 : i1 to i32
    %c0_i32_12 = arith.constant 0 : i32
    %22 = arith.cmpi ne, %21, %c0_i32_12 : i32
    scf.if %22 {
      %c0_13 = arith.constant 0 : index
      %c0_14 = arith.constant 0 : index
      %23 = vector.load %arg5[%c0_13, %c0_14] : memref<16x128xf32, #tpu.memory_space<vmem>>, vector<16x128xf32>
      %24 = arith.addf %23, %16 : vector<16x128xf32>
      %c0_15 = arith.constant 0 : index
      %c0_16 = arith.constant 0 : index
      %25 = vector.load %arg5[%c0_15, %c0_16] : memref<16x128xf32, #tpu.memory_space<vmem>>, vector<16x128xf32>
      tpu.vector_store %arg5[%c0_15, %c0_16], %24 {strides = array<i32>} : memref<16x128xf32, #tpu.memory_space<vmem>>, vector<16x128xf32>,
    } else {
    }
    return
  }
  func.func @transform_0(%arg0: i32, %arg1: i32) -> (i32, i32) {
    %c0_i32 = arith.constant 0 : i32
    %c0_i32_0 = arith.constant 0 : i32
    return %arg0, %c0_i32 : i32, i32
  }
  func.func @transform_1(%arg0: i32, %arg1: i32) -> (i32, i32, i32) {
    %c0_i32 = arith.constant 0 : i32
    %c0_i32_0 = arith.constant 0 : i32
    %c0_i32_1 = arith.constant 0 : i32
    return %arg1, %c0_i32, %c0_i32_0 : i32, i32, i32
  }
  func.func @transform_2(%arg0: i32, %arg1: i32) -> (i32, i32, i32) {
    %c0_i32 = arith.constant 0 : i32
    %c0_i32_0 = arith.constant 0 : i32
    %c0_i32_1 = arith.constant 0 : i32
    return %arg1, %c0_i32, %c0_i32_0 : i32, i32, i32
  }
  func.func @transform_3(%arg0: i32, %arg1: i32) -> (i32, i32) {
    %c0_i32 = arith.constant 0 : i32
    %c0_i32_0 = arith.constant 0 : i32
    return %arg0, %c0_i32 : i32, i32
  }
}

</mosaic_0001>

<llo_original>
// kernel: tpu_custom_call.1
$region0: #{tpu_custom_call.1}
  #allocation0 [shape = 'u32[]', space=smem, size = 0x4, offset = 0x4, fixed_abs, tag = 'smem constant byte address 0x4 - core index']
  #allocation1 [shape = 'u32[144,128]{1,0:T(1,128)}', space=vmem, size = 0x12000, scoped, tag = 'internal scratch']
  %s0 = inlined_call_operand.hbm [shape: f32[16,128], index: 0, kind: input, shape index: {}]
  %s1 = inlined_call_operand.hbm [shape: f32[1,128,256], index: 1, kind: input, shape index: {}]
  %s2 = inlined_call_operand.hbm [shape: f32[1,128,128], index: 2, kind: input, shape index: {}]
  %s3 = inlined_call_operand.hbm [shape: f32[16,128], index: 3, kind: output, shape index: {}]
  %s4 = sld [smem:[#allocation0]]
  $region42: #{tpu_custom_call.1} parent=0
    _
  %s6 = ssub.s32 1, %s4
  %s7 = scalar_select 0, %s6, %s4
  $region1: #{tpu_custom_call.1} parent=0
    #allocation2 [shape = 'u8[8192]{0}', space=vmem, size = 0x2000, scoped, tag = 'input window, operand 0, single buffered']
    #allocation3 [shape = 's32[1]{0}', space=sflag, size = 0x4, scoped, tag = 'scoped memory for tpu_custom_call.1']
    #allocation4 [shape = 's32[1]{0}', space=sflag, size = 0x4, scoped, tag = 'scoped memory for tpu_custom_call.1']
    #allocation5 [shape = 'u8[131072]{0}', space=vmem, size = 0x20000, scoped, tag = 'input window, operand 1, single buffered']
    #allocation6 [shape = 's32[1]{0}', space=sflag, size = 0x4, scoped, tag = 'scoped memory for tpu_custom_call.1']
    #allocation7 [shape = 'u8[65536]{0}', space=vmem, size = 0x10000, scoped, tag = 'input window, operand 2, single buffered']
    #allocation8 [shape = 'u8[8192]{0}', space=vmem, size = 0x2000, scoped, tag = 'output window, operand 0, single buffered']
    %8 = vsyncpa [#allocation3], 0
    %9 = vsyncpa [#allocation6], 0
    %10 = vsyncpa [#allocation4], 0
    // Predicated region
    $region2: #{tpu_custom_call.1} parent=1 // pred_check
      _
    $region3: #{tpu_custom_call.1} parent=1 // pred_check_branch
      %12 = sbr.rel (0) target = $region5
    $region4: #{tpu_custom_call.1} parent=1 // pred_region
      %s14 = ssub.s32 256, 256
      %15 = vsyncadd [#allocation3], %s14
      %s16 = sshll.u32 [#allocation2], 4
      %s17 = int_to_ptr.vmem [resolvable:$true] %s16
      %22 = dma.hbm_to_vmem [thread:$0]  %s0, 256, %s17, [#allocation3], 128, 128, 8
    $region5: #{tpu_custom_call.1} parent=1 // pred_fallthru
      _
    // Predicated region
    $region6: #{tpu_custom_call.1} parent=1 // pred_check
      _
    $region7: #{tpu_custom_call.1} parent=1 // pred_check_branch
      %24 = sbr.rel (0) target = $region9
    $region8: #{tpu_custom_call.1} parent=1 // pred_region
      %s26 = ssub.s32 4096, 4096
      %27 = vsyncadd [#allocation6], %s26
      %s28 = sshll.u32 [#allocation5], 4
      %s29 = int_to_ptr.vmem [resolvable:$true] %s28
      %34 = dma.hbm_to_vmem [thread:$0]  %s1, 4096, %s29, [#allocation6], 256, 256, 16
    $region9: #{tpu_custom_call.1} parent=1 // pred_fallthru
      _
    // Predicated region
    $region10: #{tpu_custom_call.1} parent=1 // pred_check
      _
    $region11: #{tpu_custom_call.1} parent=1 // pred_check_branch
      %36 = sbr.rel (0) target = $region13
    $region12: #{tpu_custom_call.1} parent=1 // pred_region
      %s38 = ssub.s32 2048, 2048
      %39 = vsyncadd [#allocation6], %s38
      %s40 = sshll.u32 [#allocation7], 4
      %s41 = int_to_ptr.vmem [resolvable:$true] %s40
      %46 = dma.hbm_to_vmem [thread:$0]  %s2, 2048, %s41, [#allocation6], 128, 128, 8
    $region13: #{tpu_custom_call.1} parent=1 // pred_fallthru
      _
    // Predicated region
    $region14: #{tpu_custom_call.1} parent=1 // pred_check
      _
    $region15: #{tpu_custom_call.1} parent=1 // pred_check_branch
      %48 = sbr.rel (0) target = $region17
    $region16: #{tpu_custom_call.1} parent=1 // pred_region
      %49 = dma.done [#allocation3], 256
    $region17: #{tpu_custom_call.1} parent=1 // pred_fallthru
      _
    // Predicated region
    $region18: #{tpu_custom_call.1} parent=1 // pred_check
      _
    $region19: #{tpu_custom_call.1} parent=1 // pred_check_branch
      %51 = sbr.rel (0) target = $region21
    $region20: #{tpu_custom_call.1} parent=1 // pred_region
      %52 = dma.done [#allocation6], 4096
    $region21: #{tpu_custom_call.1} parent=1 // pred_fallthru
      _
    // Predicated region
    $region22: #{tpu_custom_call.1} parent=1 // pred_check
      _
    $region23: #{tpu_custom_call.1} parent=1 // pred_check_branch
      %54 = sbr.rel (0) target = $region25
    $region24: #{tpu_custom_call.1} parent=1 // pred_region
      %55 = dma.done [#allocation6], 2048
    $region25: #{tpu_custom_call.1} parent=1 // pred_fallthru
      _
    %v56 = vld [vmem:[#allocation2] sm:$0xff]
    %v57 = vld [vmem:[#allocation2 + $0x8] sm:$0xff]
    %v58 = vld [vmem:[#allocation5] sm:$0xff]
    %v59 = vld [vmem:[#allocation5 + $0x8] sm:$0xff]
    %v60 = vld [vmem:[#allocation5 + $0x10] sm:$0xff]
    %v61 = vld [vmem:[#allocation5 + $0x18] sm:$0xff]
    %v62 = vld [vmem:[#allocation5 + $0x20] sm:$0xff]
    %v63 = vld [vmem:[#allocation5 + $0x28] sm:$0xff]
    %v64 = vld [vmem:[#allocation5 + $0x30] sm:$0xff]
    %v65 = vld [vmem:[#allocation5 + $0x38] sm:$0xff]
    %v66 = vld [vmem:[#allocation5 + $0x40] sm:$0xff]
    %v67 = vld [vmem:[#allocation5 + $0x48] sm:$0xff]
    %v68 = vld [vmem:[#allocation5 + $0x50] sm:$0xff]
    %v69 = vld [vmem:[#allocation5 + $0x58] sm:$0xff]
    %v70 = vld [vmem:[#allocation5 + $0x60] sm:$0xff]
    %v71 = vld [vmem:[#allocation5 + $0x68] sm:$0xff]
    %v72 = vld [vmem:[#allocation5 + $0x70] sm:$0xff]
    %v73 = vld [vmem:[#allocation5 + $0x78] sm:$0xff]
    %v74 = vld [vmem:[#allocation5 + $0x80] sm:$0xff]
    %v75 = vld [vmem:[#allocation5 + $0x88] sm:$0xff]
    %v76 = vld [vmem:[#allocation5 + $0x90] sm:$0xff]
    %v77 = vld [vmem:[#allocation5 + $0x98] sm:$0xff]
    %v78 = vld [vmem:[#allocation5 + $0xa0] sm:$0xff]
    %v79 = vld [vmem:[#allocation5 + $0xa8] sm:$0xff]
    %v80 = vld [vmem:[#allocation5 + $0xb0] sm:$0xff]
    %v81 = vld [vmem:[#allocation5 + $0xb8] sm:$0xff]
    %v82 = vld [vmem:[#allocation5 + $0xc0] sm:$0xff]
    %v83 = vld [vmem:[#allocation5 + $0xc8] sm:$0xff]
    %v84 = vld [vmem:[#allocation5 + $0xd0] sm:$0xff]
    %v85 = vld [vmem:[#allocation5 + $0xd8] sm:$0xff]
    %v86 = vld [vmem:[#allocation5 + $0xe0] sm:$0xff]
    %v87 = vld [vmem:[#allocation5 + $0xe8] sm:$0xff]
    %v88 = vld [vmem:[#allocation5 + $0xf0] sm:$0xff]
    %v89 = vld [vmem:[#allocation5 + $0xf8] sm:$0xff]
    %90 = vmatprep.subr.mxu0 %v59
    %91 = vmatpush1.msra.mxu0 %v58
    %92 = vmatprep.subr.mxu0 %v61
    %93 = vmatpush1.msra.mxu0 %v60
    %94 = vmatprep.subr.mxu0 %v63
    %95 = vmatpush1.msra.mxu0 %v62
    %96 = vmatprep.subr.mxu0 %v65
    %97 = vmatpush1.msra.mxu0 %v64
    %98 = vmatprep.subr.mxu0 %v67
    %99 = vmatpush1.msra.mxu0 %v66
    %100 = vmatprep.subr.mxu0 %v69
    %101 = vmatpush1.msra.mxu0 %v68
    %102 = vmatprep.subr.mxu0 %v71
    %103 = vmatpush1.msra.mxu0 %v70
    %104 = vmatprep.subr.mxu0 %v73
    %105 = vmatpush1.msra.mxu0 %v72
    %106 = vmatprep.subr.mxu0 %v75
    %107 = vmatpush1.msra.mxu0 %v74
    %108 = vmatprep.subr.mxu0 %v77
    %109 = vmatpush1.msra.mxu0 %v76
    %110 = vmatprep.subr.mxu0 %v79
    %111 = vmatpush1.msra.mxu0 %v78
    %112 = vmatprep.subr.mxu0 %v81
    %113 = vmatpush1.msra.mxu0 %v80
    %114 = vmatprep.subr.mxu0 %v83
    %115 = vmatpush1.msra.mxu0 %v82
    %116 = vmatprep.subr.mxu0 %v85
    %117 = vmatpush1.msra.mxu0 %v84
    %118 = vmatprep.subr.mxu0 %v87
    %119 = vmatpush1.msra.mxu0 %v86
    %120 = vmatprep.subr.mxu0 %v89
    %121 = vmatpush1.msra.mxu0 %v88
    %122 = vmatprep.subr.mxu0 0.0
    %123 = vmatpush1.msra.mxu0 0.0
    %124 = vmatprep.subr.mxu0 0.0
    %125 = vmatpush1.msra.mxu0 0.0
    %126 = vmatprep.subr.mxu0 0.0
    %127 = vmatpush1.msra.mxu0 0.0
    %128 = vmatprep.subr.mxu0 0.0
    %129 = vmatpush1.msra.mxu0 0.0
    %130 = vmatprep.subr.mxu0 0.0
    %131 = vmatpush1.msra.mxu0 0.0
    %132 = vmatprep.subr.mxu0 0.0
    %133 = vmatpush1.msra.mxu0 0.0
    %134 = vmatprep.subr.mxu0 0.0
    %135 = vmatpush1.msra.mxu0 0.0
    %136 = vmatprep.subr.mxu0 0.0
    %137 = vmatpush1.msra.mxu0 0.0
    %138 = vmatprep.subr.mxu0 0.0
    %139 = vmatpush1.msra.mxu0 0.0
    %140 = vmatprep.subr.mxu0 0.0
    %141 = vmatpush1.msra.mxu0 0.0
    %142 = vmatprep.subr.mxu0 0.0
    %143 = vmatpush1.msra.mxu0 0.0
    %144 = vmatprep.subr.mxu0 0.0
    %145 = vmatpush1.msra.mxu0 0.0
    %146 = vmatprep.subr.mxu0 0.0
    %147 = vmatpush1.msra.mxu0 0.0
    %148 = vmatprep.subr.mxu0 0.0
    %149 = vmatpush1.msra.mxu0 0.0
    %150 = vmatprep.subr.mxu0 0.0
    %151 = vmatpush1.msra.mxu0 0.0
    %152 = vmatprep.subr.mxu0 0.0
    %153 = vmatpush1.msra.mxu0 0.0
    %154 = vmatprep.mubr.f32.mxu0 0.0
    %155 = vmatmul.mubr.f32.gmra.mrb[0].mxu0 %v56
    %v156 = vpop.f32.mrb[0].mxu0
    %v157 = vadd.f32 0.0, %v156
    %v158 = vpop.f32.mrb[0].mxu0
    %v159 = vadd.f32 0.0, %v158
    %160 = vmatprep.mubr.f32.mxu0 0.0
    %161 = vmatmul.mubr.f32.gmra.mrb[0].mxu0 %v57
    %v162 = vpop.f32.mrb[0].mxu0
    %v163 = vadd.f32 0.0, %v162
    %v164 = vpop.f32.mrb[0].mxu0
    %v165 = vadd.f32 0.0, %v164
    %166 = vdwg.mxu0
    %v167 = vsub.f32 0.0, %v157
    %v168 = vsub.f32 0.0, %v163
    %v169 = vmul.f32 %v167, 1.442695
    %v170 = vpow.pop %v169
    %v171 = vmul.f32 %v168, 1.442695
    %v172 = vpow.pop %v171
    %v173 = vadd.f32 %v170, 1.0
    %v174 = vadd.f32 %v172, 1.0
    %v175 = vrcp.pop %v173
    %v176 = vrcp.pop %v174
    %v177 = vmul.f32 %v157, %v175
    %v178 = vmul.f32 %v163, %v176
    %v179 = vmul.f32 %v177, %v159
    %v180 = vmul.f32 %v178, %v165
    %v181 = vld [vmem:[#allocation7] sm:$0xff]
    %v182 = vld [vmem:[#allocation7 + $0x8] sm:$0xff]
    %v183 = vld [vmem:[#allocation7 + $0x10] sm:$0xff]
    %v184 = vld [vmem:[#allocation7 + $0x18] sm:$0xff]
    %v185 = vld [vmem:[#allocation7 + $0x20] sm:$0xff]
    %v186 = vld [vmem:[#allocation7 + $0x28] sm:$0xff]
    %v187 = vld [vmem:[#allocation7 + $0x30] sm:$0xff]
    %v188 = vld [vmem:[#allocation7 + $0x38] sm:$0xff]
    %v189 = vld [vmem:[#allocation7 + $0x40] sm:$0xff]
    %v190 = vld [vmem:[#allocation7 + $0x48] sm:$0xff]
    %v191 = vld [vmem:[#allocation7 + $0x50] sm:$0xff]
    %v192 = vld [vmem:[#allocation7 + $0x58] sm:$0xff]
    %v193 = vld [vmem:[#allocation7 + $0x60] sm:$0xff]
    %v194 = vld [vmem:[#allocation7 + $0x68] sm:$0xff]
    %v195 = vld [vmem:[#allocation7 + $0x70] sm:$0xff]
    %v196 = vld [vmem:[#allocation7 + $0x78] sm:$0xff]
    %197 = vmatprep.subr.mxu0 0.0
    %198 = vmatpush1.msra.mxu0 %v181
    %199 = vmatprep.subr.mxu0 0.0
    %200 = vmatpush1.msra.mxu0 %v182
    %201 = vmatprep.subr.mxu0 0.0
    %202 = vmatpush1.msra.mxu0 %v183
    %203 = vmatprep.subr.mxu0 0.0
    %204 = vmatpush1.msra.mxu0 %v184
    %205 = vmatprep.subr.mxu0 0.0
    %206 = vmatpush1.msra.mxu0 %v185
    %207 = vmatprep.subr.mxu0 0.0
    %208 = vmatpush1.msra.mxu0 %v186
    %209 = vmatprep.subr.mxu0 0.0
    %210 = vmatpush1.msra.mxu0 %v187
    %211 = vmatprep.subr.mxu0 0.0
    %212 = vmatpush1.msra.mxu0 %v188
    %213 = vmatprep.subr.mxu0 0.0
    %214 = vmatpush1.msra.mxu0 %v189
    %215 = vmatprep.subr.mxu0 0.0
    %216 = vmatpush1.msra.mxu0 %v190
    %217 = vmatprep.subr.mxu0 0.0
    %218 = vmatpush1.msra.mxu0 %v191
    %219 = vmatprep.subr.mxu0 0.0
    %220 = vmatpush1.msra.mxu0 %v192
    %221 = vmatprep.subr.mxu0 0.0
    %222 = vmatpush1.msra.mxu0 %v193
    %223 = vmatprep.subr.mxu0 0.0
    %224 = vmatpush1.msra.mxu0 %v194
    %225 = vmatprep.subr.mxu0 0.0
    %226 = vmatpush1.msra.mxu0 %v195
    %227 = vmatprep.subr.mxu0 0.0
    %228 = vmatpush1.msra.mxu0 %v196
    %229 = vmatprep.subr.mxu0 0.0
    %230 = vmatpush1.msra.mxu0 0.0
    %231 = vmatprep.subr.mxu0 0.0
    %232 = vmatpush1.msra.mxu0 0.0
    %233 = vmatprep.subr.mxu0 0.0
    %234 = vmatpush1.msra.mxu0 0.0
    %235 = vmatprep.subr.mxu0 0.0
    %236 = vmatpush1.msra.mxu0 0.0
    %237 = vmatprep.subr.mxu0 0.0
    %238 = vmatpush1.msra.mxu0 0.0
    %239 = vmatprep.subr.mxu0 0.0
    %240 = vmatpush1.msra.mxu0 0.0
    %241 = vmatprep.subr.mxu0 0.0
    %242 = vmatpush1.msra.mxu0 0.0
    %243 = vmatprep.subr.mxu0 0.0
    %244 = vmatpush1.msra.mxu0 0.0
    %245 = vmatprep.subr.mxu0 0.0
    %246 = vmatpush1.msra.mxu0 0.0
    %247 = vmatprep.subr.mxu0 0.0
    %248 = vmatpush1.msra.mxu0 0.0
    %249 = vmatprep.subr.mxu0 0.0
    %250 = vmatpush1.msra.mxu0 0.0
    %251 = vmatprep.subr.mxu0 0.0
    %252 = vmatpush1.msra.mxu0 0.0
    %253 = vmatprep.subr.mxu0 0.0
    %254 = vmatpush1.msra.mxu0 0.0
    %255 = vmatprep.subr.mxu0 0.0
    %256 = vmatpush1.msra.mxu0 0.0
    %257 = vmatprep.subr.mxu0 0.0
    %258 = vmatpush1.msra.mxu0 0.0
    %259 = vmatprep.subr.mxu0 0.0
    %260 = vmatpush1.msra.mxu0 0.0
    %261 = vmatprep.mubr.f32.mxu0 0.0
    %262 = vmatmul.mubr.f32.gmra.mrb[0].mxu0 %v179
    %v263 = vpop.f32.mrb[0].mxu0
    %v264 = vadd.f32 0.0, %v263
    %v265 = vpop.f32.mrb[0].mxu0
    %266 = vmatprep.mubr.f32.mxu0 0.0
    %267 = vmatmul.mubr.f32.gmra.mrb[0].mxu0 %v180
    %v268 = vpop.f32.mrb[0].mxu0
    %v269 = vadd.f32 0.0, %v268
    %v270 = vpop.f32.mrb[0].mxu0
    %271 = vdwg.mxu0
    %p272 = scmp.eq.s32.totalorder 0, 0
    // Predicated region
    $region26: #{tpu_custom_call.1} parent=1 // pred_check
      %p273 = pneg %p272
    $region27: #{tpu_custom_call.1} parent=1 // pred_check_branch
      %275 = sbr.rel (%p273) target = $region29
    $region28: #{tpu_custom_call.1} parent=1 // pred_region
      %276 = vst [vmem:[#allocation8] sm:$0xff] %v264
      %277 = vst [vmem:[#allocation8 + $0x8] sm:$0xff] %v269
    $region29: #{tpu_custom_call.1} parent=1 // pred_fallthru
      _
    %p278 = scmp.gt.s32.totalorder 0, 0
    // Predicated region
    $region30: #{tpu_custom_call.1} parent=1 // pred_check
      %p279 = pneg %p278
    $region31: #{tpu_custom_call.1} parent=1 // pred_check_branch
      %281 = sbr.rel (%p279) target = $region33
    $region32: #{tpu_custom_call.1} parent=1 // pred_region
      %v282 = vld [vmem:[#allocation8] sm:$0xff]
      %v283 = vld [vmem:[#allocation8 + $0x8] sm:$0xff]
      %v284 = vadd.f32 %v282, %v264
      %v285 = vadd.f32 %v283, %v269
      %286 = vst [vmem:[#allocation8] sm:$0xff] %v284
      %287 = vst [vmem:[#allocation8 + $0x8] sm:$0xff] %v285
    $region33: #{tpu_custom_call.1} parent=1 // pred_fallthru
      _
    // Predicated region
    $region34: #{tpu_custom_call.1} parent=1 // pred_check
      _
    $region35: #{tpu_custom_call.1} parent=1 // pred_check_branch
      %289 = sbr.rel (0) target = $region37
    $region36: #{tpu_custom_call.1} parent=1 // pred_region
      %s291 = ssub.s32 256, 256
      %292 = vsyncadd [#allocation4], %s291
      %s293 = sshll.u32 [#allocation8], 4
      %s294 = int_to_ptr.vmem [resolvable:$true] %s293
      %299 = dma.vmem_to_hbm [thread:$0]  %s294, 256, %s3, [#allocation4], 128, 128, 8
    $region37: #{tpu_custom_call.1} parent=1 // pred_fallthru
      _
    // Predicated region
    $region38: #{tpu_custom_call.1} parent=1 // pred_check
      _
    $region39: #{tpu_custom_call.1} parent=1 // pred_check_branch
      %301 = sbr.rel (0) target = $region41
    $region40: #{tpu_custom_call.1} parent=1 // pred_region
      %302 = dma.done [#allocation4], 256
    $region41: #{tpu_custom_call.1} parent=1 // pred_fallthru
      _
    %303 = vsyncpa [#allocation3], 1
    %304 = vsyncpa [#allocation6], 1
    %305 = vsyncpa [#allocation4], 1

</llo_original>
